<compile_context>
chip_gen: v7x
topology: tpu7x:2x2x1
jax: 0.10.0
libtpu: 0.0.40
codegen_flags: <defaults>
</compile_context>

<pallas_src>
import functools

import jax
import jax.numpy as jnp
from jax.experimental import pallas as pl
from jax.experimental.pallas import tpu as pltpu

LANE = 128
SUBLANE = 8


def _round_up(n, m):
    return ((n + m - 1) // m) * m


# ----------------------------------------------------------------------------
# Kernel
# ----------------------------------------------------------------------------
def actor_critic_kernel(x_ref, w1_ref, w2_ref, wh_ref, bias_ref, out_ref, *, hp):
    """One batch tile: two hidden layers + fused (actor|value) head."""
    x = x_ref[...]
    cdt = x.dtype  # weight / activation storage dtype (f32 or bf16)

    # static, 128-aligned slices of the packed bias row
    b1 = bias_ref[:, 0:hp]
    b2 = bias_ref[:, hp:2 * hp]
    bh = bias_ref[:, 2 * hp:]

    # fc1 + ReLU  (f32 accumulation on the MXU, then back to compute dtype)
    h1 = jnp.dot(x, w1_ref[...], preferred_element_type=jnp.float32)
    h1 = jnp.maximum(h1 + b1, 0.0).astype(cdt)

    # fc2 + ReLU
    h2 = jnp.dot(h1, w2_ref[...], preferred_element_type=jnp.float32)
    h2 = jnp.maximum(h2 + b2, 0.0).astype(cdt)

    # fused actor|value head -> single narrow (tb, out_pad) store
    # TODO(synk): if the caller immediately applies softmax/log-softmax or
    # sampling to the logits, fuse that epilogue here (EUP slot is idle) and
    # emit only the sampled action / log-probs + value.
    res = jnp.dot(h2, wh_ref[...], preferred_element_type=jnp.float32) + bh
    out_ref[...] = res.astype(out_ref.dtype)


# ----------------------------------------------------------------------------
# Parameter packing (logical nn.Linear params -> padded / fused kernel params)
# ----------------------------------------------------------------------------
def pack_params(p, dtype=jnp.float32):
    """p holds logical params: w* stored (in, out), b* stored (out,)."""
    state_dim, hidden = p["w1"].shape
    action_dim = p["wa"].shape[1]

    hp = _round_up(hidden, LANE)                    # padded hidden width (= 128)
    out_pad = _round_up(action_dim + 1, SUBLANE)    # narrow fused-head width (= 8)

    def pad2(w, rows, cols):
        out = jnp.zeros((rows, cols), dtype)
        return out.at[:w.shape[0], :w.shape[1]].set(w.astype(dtype))

    w1 = pad2(p["w1"], state_dim, hp)
    w2 = pad2(p["w2"], hp, hp)
    wh = pad2(jnp.concatenate([p["wa"], p["wv"]], axis=1), hp, out_pad)

    b1 = jnp.zeros((hp,), dtype).at[:hidden].set(p["b1"].astype(dtype))
    b2 = jnp.zeros((hp,), dtype).at[:hidden].set(p["b2"].astype(dtype))
    bh = jnp.zeros((out_pad,), dtype).at[:action_dim].set(p["ba"].astype(dtype))
    bh = bh.at[action_dim].set(p["bv"][0].astype(dtype))
    bias = jnp.concatenate([b1, b2, bh]).reshape(1, -1)   # (1, 2*hp + out_pad)

    return {
        "w1": w1, "w2": w2, "wh": wh, "bias": bias,
        "hp": hp, "out_pad": out_pad,
        "state_dim": state_dim, "hidden": hidden, "action_dim": action_dim,
        "dtype": dtype,
    }


# ----------------------------------------------------------------------------
# Forward wrapper
# ----------------------------------------------------------------------------
def actor_critic_forward(state, kp, *, tb=None):
    b, state_dim = state.shape
    hp, out_pad, action_dim = kp["hp"], kp["out_pad"], kp["action_dim"]

    if tb is None:
        # Large tiles amortize the ~0.35 us per-grid-step overhead (kernel is
        # memory / step-overhead bound); VMEM at tb=2048 is only ~2.5 MiB f32.
        tb = min(2048, _round_up(b, SUBLANE))
        # Guarantee >= 2 grid steps when possible so the "parallel" batch axis
        # can shard across both TensorCores on v7x (neutral on v5e/v6e).
        if b > SUBLANE:
            tb = min(tb, max(SUBLANE, _round_up(pl.cdiv(b, 2), SUBLANE)))

    grid = (pl.cdiv(b, tb),)   # no wrapper-side pad: ragged last block is fine

    x = state.astype(kp["dtype"])

    elt = jnp.dtype(kp["dtype"]).itemsize
    flops = 2 * b * (state_dim * hp + hp * hp + hp * out_pad)
    bytes_accessed = (
        x.size * elt
        + (kp["w1"].size + kp["w2"].size + kp["wh"].size + kp["bias"].size) * elt
        + b * out_pad * 4
    )
    cost = pl.CostEstimate(flops=flops, transcendentals=0,
                           bytes_accessed=bytes_accessed)

    out = pl.pallas_call(
        functools.partial(actor_critic_kernel, hp=hp),
        out_shape=jax.ShapeDtypeStruct((b, out_pad), jnp.float32),
        grid_spec=pltpu.PrefetchScalarGridSpec(
            num_scalar_prefetch=0,
            grid=grid,
            in_specs=[
                # activations: tiled over batch (double-buffered)
                pl.BlockSpec((tb, state_dim), lambda i: (i, 0)),
                # weights / packed bias: constant index_map -> loaded once,
                # resident in VMEM across the whole grid
                pl.BlockSpec((state_dim, hp), lambda i: (0, 0)),
                pl.BlockSpec((hp, hp), lambda i: (0, 0)),
                pl.BlockSpec((hp, out_pad), lambda i: (0, 0)),
                pl.BlockSpec((1, 2 * hp + out_pad), lambda i: (0, 0)),
            ],
            out_specs=pl.BlockSpec((tb, out_pad), lambda i: (i, 0)),
        ),
        compiler_params=pltpu.CompilerParams(
            dimension_semantics=("parallel",),   # batch shards across v7x's 2 TCs
        ),
        cost_estimate=cost,
    )(x, kp["w1"], kp["w2"], kp["wh"], kp["bias"])

    # Tiny slices over a (b, 8) array (25x cheaper than the old 128-wide slab).
    logits = out[:, :action_dim]
    value = out[:, action_dim:action_dim + 1]
    return logits, value


# ----------------------------------------------------------------------------
# Init + reference
# ----------------------------------------------------------------------------
def init_params(key, state_dim, action_dim, hidden_dim):
    """Matches nn.Linear shapes; weights stored (in, out), biases (out,)."""
    ks = jax.random.split(key, 8)

    def lin(kw, kb, fan_in, fan_out):
        bound = 1.0 / jnp.sqrt(fan_in)
        w = jax.random.uniform(kw, (fan_in, fan_out), jnp.float32, -bound, bound)
        b = jax.random.uniform(kb, (fan_out,), jnp.float32, -bound, bound)
        return w, b

    w1, b1 = lin(ks[0], ks[1], state_dim, hidden_dim)
    w2, b2 = lin(ks[2], ks[3], hidden_dim, hidden_dim)
    wa, ba = lin(ks[4], ks[5], hidden_dim, action_dim)
    wv, bv = lin(ks[6], ks[7], hidden_dim, 1)
    return {"w1": w1, "b1": b1, "w2": w2, "b2": b2,
            "wa": wa, "ba": ba, "wv": wv, "bv": bv}


def reference_forward(state, p):
    dot = functools.partial(jnp.dot, precision="highest")
    h1 = jnp.maximum(dot(state, p["w1"]) + p["b1"], 0.0)
    h2 = jnp.maximum(dot(h1, p["w2"]) + p["b2"], 0.0)
    return dot(h2, p["wa"]) + p["ba"], dot(h2, p["wv"]) + p["bv"]


# ----------------------------------------------------------------------------
if __name__ == "__main__":
    state_dim, action_dim, hidden_dim = 16, 4, 128  # module default hidden_dim

    key = jax.random.PRNGKey(0)
    k_params, k_small, k_big, k_rag = jax.random.split(key, 4)
    params = init_params(k_params, state_dim, action_dim, hidden_dim)
    kparams = pack_params(params, dtype=jnp.float32)

    def check(state, tag):
        logits, value = actor_critic_forward(state, kparams)
        jax.block_until_ready((logits, value))
        ref_logits, ref_value = reference_forward(state, params)
        assert logits.shape == (state.shape[0], action_dim), tag
        assert value.shape == (state.shape[0], 1), tag
        # Kernel dots use default MXU f32 precision (not Precision.HIGHEST);
        # tolerance intentionally set to 1e-3 (measured error at these shapes
        # is < 1e-4).
        assert jnp.allclose(logits, ref_logits, atol=1e-3, rtol=1e-3), tag
        assert jnp.allclose(value, ref_value, atol=1e-3, rtol=1e-3), tag

    # small batch: single tile
    check(jax.random.normal(k_small, (8, state_dim), jnp.float32), "small")
    # larger batch: grid > 1 (504 + 496 rows), both-TC path on v7x
    check(jax.random.normal(k_big, (1000, state_dim), jnp.float32), "big")
    # odd batch: exercises the un-padded ragged-last-block path explicitly
    check(jax.random.normal(k_rag, (10, state_dim), jnp.float32), "ragged")

    print("KERNEL_OK")
</pallas_src>

<mosaic_0001>
module attributes {stable_mosaic.version = 11 : i64} {
  func.func @actor_critic_kernel(%arg0: i32, %arg1: memref<8x16xf32, #tpu.memory_space<vmem>>, %arg2: memref<16x128xf32, #tpu.memory_space<vmem>>, %arg3: memref<128x128xf32, #tpu.memory_space<vmem>>, %arg4: memref<128x8xf32, #tpu.memory_space<vmem>>, %arg5: memref<1x264xf32, #tpu.memory_space<vmem>>, %arg6: memref<8x8xf32, #tpu.memory_space<vmem>>) attributes {dimension_semantics = [#tpu.dimension_semantics<parallel>], iteration_bounds = array<i64: 1>, scalar_prefetch = 0 : i64, scratch_operands = 0 : i64, tpu.core_type = #tpu.core_type<tc>, window_params = [{transform_indices = @transform_0, window_bounds = array<i64: 8, 16>}, {pipeline_mode = #tpu.pipeline_mode<synchronous>, transform_indices = @transform_1, window_bounds = array<i64: 16, 128>}, {pipeline_mode = #tpu.pipeline_mode<synchronous>, transform_indices = @transform_2, window_bounds = array<i64: 128, 128>}, {pipeline_mode = #tpu.pipeline_mode<synchronous>, transform_indices = @transform_3, window_bounds = array<i64: 128, 8>}, {pipeline_mode = #tpu.pipeline_mode<synchronous>, transform_indices = @transform_4, window_bounds = array<i64: 1, 264>}, {transform_indices = @transform_5, window_bounds = array<i64: 8, 8>}]} {
    %c0 = arith.constant 0 : index
    %c0_0 = arith.constant 0 : index
    %0 = vector.load %arg1[%c0, %c0_0] : memref<8x16xf32, #tpu.memory_space<vmem>>, vector<8x16xf32>
    %c0_1 = arith.constant 0 : index
    %c0_2 = arith.constant 0 : index
    %1 = vector.load %arg5[%c0_1, %c0_2] : memref<1x264xf32, #tpu.memory_space<vmem>>, vector<1x128xf32>
    %c0_3 = arith.constant 0 : index
    %c128 = arith.constant 128 : index
    %2 = vector.load %arg5[%c0_3, %c128] : memref<1x264xf32, #tpu.memory_space<vmem>>, vector<1x128xf32>
    %c0_4 = arith.constant 0 : index
    %c256 = arith.constant 256 : index
    %3 = vector.load %arg5[%c0_4, %c256] : memref<1x264xf32, #tpu.memory_space<vmem>>, vector<1x8xf32>
    %c0_5 = arith.constant 0 : index
    %c0_6 = arith.constant 0 : index
    %4 = vector.load %arg2[%c0_5, %c0_6] : memref<16x128xf32, #tpu.memory_space<vmem>>, vector<16x128xf32>
    %cst = arith.constant dense<0.000000e+00> : vector<8x128xf32>
    %5 = tpu.matmul %0, %4, %cst {dimension_numbers = #tpu.dot_dimension_numbers<[1], [0], [0], [1], [0, 0, 1, 1], [], []>} : vector<8x16xf32>, vector<16x128xf32>, vector<8x128xf32> -> vector<8x128xf32>
    %6 = vector.broadcast %1 : vector<1x128xf32> to vector<8x128xf32>
    %7 = arith.addf %5, %6 : vector<8x128xf32>
    %cst_7 = arith.constant 0.000000e+00 : f32
    %8 = vector.broadcast %cst_7 : f32 to vector<8x128xf32>
    %9 = arith.maximumf %7, %8 : vector<8x128xf32>
    %c0_8 = arith.constant 0 : index
    %c0_9 = arith.constant 0 : index
    %10 = vector.load %arg3[%c0_8, %c0_9] : memref<128x128xf32, #tpu.memory_space<vmem>>, vector<128x128xf32>
    %cst_10 = arith.constant dense<0.000000e+00> : vector<8x128xf32>
    %11 = tpu.matmul %9, %10, %cst_10 {dimension_numbers = #tpu.dot_dimension_numbers<[1], [0], [0], [1], [0, 0, 1, 1], [], []>} : vector<8x128xf32>, vector<128x128xf32>, vector<8x128xf32> -> vector<8x128xf32>
    %12 = vector.broadcast %2 : vector<1x128xf32> to vector<8x128xf32>
    %13 = arith.addf %11, %12 : vector<8x128xf32>
    %cst_11 = arith.constant 0.000000e+00 : f32
    %14 = vector.broadcast %cst_11 : f32 to vector<8x128xf32>
    %15 = arith.maximumf %13, %14 : vector<8x128xf32>
    %c0_12 = arith.constant 0 : index
    %c0_13 = arith.constant 0 : index
    %16 = vector.load %arg4[%c0_12, %c0_13] : memref<128x8xf32, #tpu.memory_space<vmem>>, vector<128x8xf32>
    %cst_14 = arith.constant dense<0.000000e+00> : vector<8x8xf32>
    %17 = tpu.matmul %15, %16, %cst_14 {dimension_numbers = #tpu.dot_dimension_numbers<[1], [0], [0], [1], [0, 0, 1, 1], [], []>} : vector<8x128xf32>, vector<128x8xf32>, vector<8x8xf32> -> vector<8x8xf32>
    %18 = vector.broadcast %3 : vector<1x8xf32> to vector<8x8xf32>
    %19 = arith.addf %17, %18 : vector<8x8xf32>
    %c0_15 = arith.constant 0 : index
    %c0_16 = arith.constant 0 : index
    %20 = vector.load %arg6[%c0_15, %c0_16] : memref<8x8xf32, #tpu.memory_space<vmem>>, vector<8x8xf32>
    tpu.vector_store %arg6[%c0_15, %c0_16], %19 {strides = array<i32>} : memref<8x8xf32, #tpu.memory_space<vmem>>, vector<8x8xf32>,
    return
  }
  func.func @transform_0(%arg0: i32) -> (i32, i32) {
    %c0_i32 = arith.constant 0 : i32
    %c0_i32_0 = arith.constant 0 : i32
    return %arg0, %c0_i32 : i32, i32
  }
  func.func @transform_1(%arg0: i32) -> (i32, i32) {
    %c0_i32 = arith.constant 0 : i32
    %c0_i32_0 = arith.constant 0 : i32
    %c0_i32_1 = arith.constant 0 : i32
    return %c0_i32, %c0_i32_0 : i32, i32
  }
  func.func @transform_2(%arg0: i32) -> (i32, i32) {
    %c0_i32 = arith.constant 0 : i32
    %c0_i32_0 = arith.constant 0 : i32
    %c0_i32_1 = arith.constant 0 : i32
    return %c0_i32, %c0_i32_0 : i32, i32
  }
  func.func @transform_3(%arg0: i32) -> (i32, i32) {
    %c0_i32 = arith.constant 0 : i32
    %c0_i32_0 = arith.constant 0 : i32
    %c0_i32_1 = arith.constant 0 : i32
    return %c0_i32, %c0_i32_0 : i32, i32
  }
  func.func @transform_4(%arg0: i32) -> (i32, i32) {
    %c0_i32 = arith.constant 0 : i32
    %c0_i32_0 = arith.constant 0 : i32
    %c0_i32_1 = arith.constant 0 : i32
    return %c0_i32, %c0_i32_0 : i32, i32
  }
  func.func @transform_5(%arg0: i32) -> (i32, i32) {
    %c0_i32 = arith.constant 0 : i32
    %c0_i32_0 = arith.constant 0 : i32
    return %arg0, %c0_i32 : i32, i32
  }
}

</mosaic_0001>

<llo_original>
// kernel: tpu_custom_call.1
$region0: #{tpu_custom_call.1}
  #allocation0 [shape = 'u32[]', space=smem, size = 0x4, offset = 0x4, fixed_abs, tag = 'smem constant byte address 0x4 - core index']
  #allocation1 [shape = 'u32[144,128]{1,0:T(1,128)}', space=vmem, size = 0x12000, scoped, tag = 'internal scratch']
  %s0 = inlined_call_operand.vmem [shape: f32[8,16], index: 0, kind: input, shape index: {}]
  %s1 = inlined_call_operand.hbm [shape: f32[16,128], index: 1, kind: input, shape index: {}]
  %s2 = inlined_call_operand.vmem [shape: f32[128,128], index: 2, kind: input, shape index: {}]
  %s3 = inlined_call_operand.vmem [shape: f32[128,8], index: 3, kind: input, shape index: {}]
  %s4 = inlined_call_operand.vmem [shape: f32[1,264], index: 4, kind: input, shape index: {}]
  %s5 = inlined_call_operand.hbm [shape: f32[8,8], index: 5, kind: output, shape index: {}]
  %s6 = sld [smem:[#allocation0]]
  $region34: #{tpu_custom_call.1} parent=0
    _
  %s8 = ssub.s32 1, %s6
  %s9 = scalar_select 0, %s8, %s6
  $region1: #{tpu_custom_call.1} parent=0
    #allocation2 [shape = 'u8[8192]{0}', space=vmem, size = 0x2000, scoped, tag = 'input window, operand 1, single buffered']
    #allocation3 [shape = 's32[1]{0}', space=sflag, size = 0x4, scoped, tag = 'scoped memory for tpu_custom_call.1']
    #allocation4 [shape = 's32[1]{0}', space=sflag, size = 0x4, scoped, tag = 'scoped memory for tpu_custom_call.1']
    #allocation5 [shape = 'u8[4096]{0}', space=vmem, size = 0x1000, scoped, tag = 'output window, operand 0, single buffered']
    %10 = vsyncpa [#allocation3], 0
    %11 = vsyncpa [#allocation4], 0
    // Predicated region
    $region2: #{tpu_custom_call.1} parent=1 // pred_check
      _
    $region3: #{tpu_custom_call.1} parent=1 // pred_check_branch
      %13 = sbr.rel (0) target = $region5
    $region4: #{tpu_custom_call.1} parent=1 // pred_region
      _
    $region5: #{tpu_custom_call.1} parent=1 // pred_fallthru
      _
    // Predicated region
    $region6: #{tpu_custom_call.1} parent=1 // pred_check
      _
    $region7: #{tpu_custom_call.1} parent=1 // pred_check_branch
      %15 = sbr.rel (0) target = $region9
    $region8: #{tpu_custom_call.1} parent=1 // pred_region
      %s17 = ssub.s32 256, 256
      %18 = vsyncadd [#allocation3], %s17
      %s19 = sshll.u32 [#allocation2], 4
      %s20 = int_to_ptr.vmem [resolvable:$true] %s19
      %25 = dma.hbm_to_vmem [thread:$0]  %s1, 256, %s20, [#allocation3], 128, 128, 8
    $region9: #{tpu_custom_call.1} parent=1 // pred_fallthru
      _
    // Predicated region
    $region10: #{tpu_custom_call.1} parent=1 // pred_check
      _
    $region11: #{tpu_custom_call.1} parent=1 // pred_check_branch
      %27 = sbr.rel (0) target = $region13
    $region12: #{tpu_custom_call.1} parent=1 // pred_region
      _
    $region13: #{tpu_custom_call.1} parent=1 // pred_fallthru
      _
    // Predicated region
    $region14: #{tpu_custom_call.1} parent=1 // pred_check
      _
    $region15: #{tpu_custom_call.1} parent=1 // pred_check_branch
      %29 = sbr.rel (0) target = $region17
    $region16: #{tpu_custom_call.1} parent=1 // pred_region
      _
    $region17: #{tpu_custom_call.1} parent=1 // pred_fallthru
      _
    // Predicated region
    $region18: #{tpu_custom_call.1} parent=1 // pred_check
      _
    $region19: #{tpu_custom_call.1} parent=1 // pred_check_branch
      %31 = sbr.rel (0) target = $region21
    $region20: #{tpu_custom_call.1} parent=1 // pred_region
      _
    $region21: #{tpu_custom_call.1} parent=1 // pred_fallthru
      _
    // Predicated region
    $region22: #{tpu_custom_call.1} parent=1 // pred_check
      _
    $region23: #{tpu_custom_call.1} parent=1 // pred_check_branch
      %33 = sbr.rel (0) target = $region25
    $region24: #{tpu_custom_call.1} parent=1 // pred_region
      %34 = dma.done [#allocation3], 256
    $region25: #{tpu_custom_call.1} parent=1 // pred_fallthru
      _
    %v35 = vld [vmem:[%s0] sm:$0xff]
    %v36 = vld [vmem:[%s4] sm:$0x1]
    %v37 = vld [vmem:[%s4 + $0x1] sm:$0x1]
    %v38 = vld [vmem:[%s4 + $0x2] sm:$0x1]
    %v39 = vld [vmem:[#allocation2] sm:$0xff]
    %v40 = vld [vmem:[#allocation2 + $0x8] sm:$0xff]
    %v42 = vlaneseq
    %v43 = vshrl.u32 %v42, 7
    %v44 = vsub.s32 0, %v43
    %v45 = vrot.slane %v36, %v44
    %vm47 = vcmask 130048
    %v49 = vsel %vm47, %v35, 0
    %51 = vmatprep.subr.mxu0 0.0
    %52 = vmatpush1.msra.mxu0 %v39
    %53 = vmatprep.subr.mxu0 0.0
    %54 = vmatpush1.msra.mxu0 %v40
    %55 = vmatprep.subr.mxu0 0.0
    %56 = vmatpush1.msra.mxu0 0.0
    %57 = vmatprep.subr.mxu0 0.0
    %58 = vmatpush1.msra.mxu0 0.0
    %59 = vmatprep.subr.mxu0 0.0
    %60 = vmatpush1.msra.mxu0 0.0
    %61 = vmatprep.subr.mxu0 0.0
    %62 = vmatpush1.msra.mxu0 0.0
    %63 = vmatprep.subr.mxu0 0.0
    %64 = vmatpush1.msra.mxu0 0.0
    %65 = vmatprep.subr.mxu0 0.0
    %66 = vmatpush1.msra.mxu0 0.0
    %67 = vmatprep.subr.mxu0 0.0
    %68 = vmatpush1.msra.mxu0 0.0
    %69 = vmatprep.subr.mxu0 0.0
    %70 = vmatpush1.msra.mxu0 0.0
    %71 = vmatprep.subr.mxu0 0.0
    %72 = vmatpush1.msra.mxu0 0.0
    %73 = vmatprep.subr.mxu0 0.0
    %74 = vmatpush1.msra.mxu0 0.0
    %75 = vmatprep.subr.mxu0 0.0
    %76 = vmatpush1.msra.mxu0 0.0
    %77 = vmatprep.subr.mxu0 0.0
    %78 = vmatpush1.msra.mxu0 0.0
    %79 = vmatprep.subr.mxu0 0.0
    %80 = vmatpush1.msra.mxu0 0.0
    %81 = vmatprep.subr.mxu0 0.0
    %82 = vmatpush1.msra.mxu0 0.0
    %83 = vmatprep.subr.mxu0 0.0
    %84 = vmatpush1.msra.mxu0 0.0
    %85 = vmatprep.subr.mxu0 0.0
    %86 = vmatpush1.msra.mxu0 0.0
    %87 = vmatprep.subr.mxu0 0.0
    %88 = vmatpush1.msra.mxu0 0.0
    %89 = vmatprep.subr.mxu0 0.0
    %90 = vmatpush1.msra.mxu0 0.0
    %91 = vmatprep.subr.mxu0 0.0
    %92 = vmatpush1.msra.mxu0 0.0
    %93 = vmatprep.subr.mxu0 0.0
    %94 = vmatpush1.msra.mxu0 0.0
    %95 = vmatprep.subr.mxu0 0.0
    %96 = vmatpush1.msra.mxu0 0.0
    %97 = vmatprep.subr.mxu0 0.0
    %98 = vmatpush1.msra.mxu0 0.0
    %99 = vmatprep.subr.mxu0 0.0
    %100 = vmatpush1.msra.mxu0 0.0
    %101 = vmatprep.subr.mxu0 0.0
    %102 = vmatpush1.msra.mxu0 0.0
    %103 = vmatprep.subr.mxu0 0.0
    %104 = vmatpush1.msra.mxu0 0.0
    %105 = vmatprep.subr.mxu0 0.0
    %106 = vmatpush1.msra.mxu0 0.0
    %107 = vmatprep.subr.mxu0 0.0
    %108 = vmatpush1.msra.mxu0 0.0
    %109 = vmatprep.subr.mxu0 0.0
    %110 = vmatpush1.msra.mxu0 0.0
    %111 = vmatprep.subr.mxu0 0.0
    %112 = vmatpush1.msra.mxu0 0.0
    %113 = vmatprep.subr.mxu0 0.0
    %114 = vmatpush1.msra.mxu0 0.0
    %115 = vmatprep.mubr.f32.mxu0 0.0
    %116 = vmatmul.mubr.f32.gmra.mrb[0].mxu0 %v49
    %v117 = vpop.f32.mrb[0].mxu0
    %v118 = vadd.f32 %v45, %v117
    %v119 = vpop.f32.mrb[0].mxu0
    %120 = vdwg.mxu0
    %v121 = vmax.f32 %v118, 0.0
    %v122 = vld [vmem:[%s2] sm:$0xff]
    %v123 = vld [vmem:[%s2 + $0x8] sm:$0xff]
    %v124 = vld [vmem:[%s2 + $0x10] sm:$0xff]
    %v125 = vld [vmem:[%s2 + $0x18] sm:$0xff]
    %v126 = vld [vmem:[%s2 + $0x20] sm:$0xff]
    %v127 = vld [vmem:[%s2 + $0x28] sm:$0xff]
    %v128 = vld [vmem:[%s2 + $0x30] sm:$0xff]
    %v129 = vld [vmem:[%s2 + $0x38] sm:$0xff]
    %v130 = vld [vmem:[%s2 + $0x40] sm:$0xff]
    %v131 = vld [vmem:[%s2 + $0x48] sm:$0xff]
    %v132 = vld [vmem:[%s2 + $0x50] sm:$0xff]
    %v133 = vld [vmem:[%s2 + $0x58] sm:$0xff]
    %v134 = vld [vmem:[%s2 + $0x60] sm:$0xff]
    %v135 = vld [vmem:[%s2 + $0x68] sm:$0xff]
    %v136 = vld [vmem:[%s2 + $0x70] sm:$0xff]
    %v137 = vld [vmem:[%s2 + $0x78] sm:$0xff]
    %v139 = vlaneseq
    %v140 = vshrl.u32 %v139, 7
    %v141 = vsub.s32 0, %v140
    %v142 = vrot.slane %v37, %v141
    %144 = vmatprep.subr.mxu0 0.0
    %145 = vmatpush1.msra.mxu0 %v122
    %146 = vmatprep.subr.mxu0 0.0
    %147 = vmatpush1.msra.mxu0 %v123
    %148 = vmatprep.subr.mxu0 0.0
    %149 = vmatpush1.msra.mxu0 %v124
    %150 = vmatprep.subr.mxu0 0.0
    %151 = vmatpush1.msra.mxu0 %v125
    %152 = vmatprep.subr.mxu0 0.0
    %153 = vmatpush1.msra.mxu0 %v126
    %154 = vmatprep.subr.mxu0 0.0
    %155 = vmatpush1.msra.mxu0 %v127
    %156 = vmatprep.subr.mxu0 0.0
    %157 = vmatpush1.msra.mxu0 %v128
    %158 = vmatprep.subr.mxu0 0.0
    %159 = vmatpush1.msra.mxu0 %v129
    %160 = vmatprep.subr.mxu0 0.0
    %161 = vmatpush1.msra.mxu0 %v130
    %162 = vmatprep.subr.mxu0 0.0
    %163 = vmatpush1.msra.mxu0 %v131
    %164 = vmatprep.subr.mxu0 0.0
    %165 = vmatpush1.msra.mxu0 %v132
    %166 = vmatprep.subr.mxu0 0.0
    %167 = vmatpush1.msra.mxu0 %v133
    %168 = vmatprep.subr.mxu0 0.0
    %169 = vmatpush1.msra.mxu0 %v134
    %170 = vmatprep.subr.mxu0 0.0
    %171 = vmatpush1.msra.mxu0 %v135
    %172 = vmatprep.subr.mxu0 0.0
    %173 = vmatpush1.msra.mxu0 %v136
    %174 = vmatprep.subr.mxu0 0.0
    %175 = vmatpush1.msra.mxu0 %v137
    %176 = vmatprep.subr.mxu0 0.0
    %177 = vmatpush1.msra.mxu0 0.0
    %178 = vmatprep.subr.mxu0 0.0
    %179 = vmatpush1.msra.mxu0 0.0
    %180 = vmatprep.subr.mxu0 0.0
    %181 = vmatpush1.msra.mxu0 0.0
    %182 = vmatprep.subr.mxu0 0.0
    %183 = vmatpush1.msra.mxu0 0.0
    %184 = vmatprep.subr.mxu0 0.0
    %185 = vmatpush1.msra.mxu0 0.0
    %186 = vmatprep.subr.mxu0 0.0
    %187 = vmatpush1.msra.mxu0 0.0
    %188 = vmatprep.subr.mxu0 0.0
    %189 = vmatpush1.msra.mxu0 0.0
    %190 = vmatprep.subr.mxu0 0.0
    %191 = vmatpush1.msra.mxu0 0.0
    %192 = vmatprep.subr.mxu0 0.0
    %193 = vmatpush1.msra.mxu0 0.0
    %194 = vmatprep.subr.mxu0 0.0
    %195 = vmatpush1.msra.mxu0 0.0
    %196 = vmatprep.subr.mxu0 0.0
    %197 = vmatpush1.msra.mxu0 0.0
    %198 = vmatprep.subr.mxu0 0.0
    %199 = vmatpush1.msra.mxu0 0.0
    %200 = vmatprep.subr.mxu0 0.0
    %201 = vmatpush1.msra.mxu0 0.0
    %202 = vmatprep.subr.mxu0 0.0
    %203 = vmatpush1.msra.mxu0 0.0
    %204 = vmatprep.subr.mxu0 0.0
    %205 = vmatpush1.msra.mxu0 0.0
    %206 = vmatprep.subr.mxu0 0.0
    %207 = vmatpush1.msra.mxu0 0.0
    %208 = vmatprep.mubr.f32.mxu0 0.0
    %209 = vmatmul.mubr.f32.gmra.mrb[0].mxu0 %v121
    %v210 = vpop.f32.mrb[0].mxu0
    %v211 = vadd.f32 %v142, %v210
    %v212 = vpop.f32.mrb[0].mxu0
    %213 = vdwg.mxu0
    %v214 = vmax.f32 %v211, 0.0
    %v215 = vld [vmem:[%s3] sm:$0xff]
    %v216 = vld [vmem:[%s3 + $0x8] sm:$0xff]
    %v217 = vld [vmem:[%s3 + $0x10] sm:$0xff]
    %v218 = vld [vmem:[%s3 + $0x18] sm:$0xff]
    %v219 = vld [vmem:[%s3 + $0x20] sm:$0xff]
    %v220 = vld [vmem:[%s3 + $0x28] sm:$0xff]
    %v221 = vld [vmem:[%s3 + $0x30] sm:$0xff]
    %v222 = vld [vmem:[%s3 + $0x38] sm:$0xff]
    %v223 = vld [vmem:[%s3 + $0x40] sm:$0xff]
    %v224 = vld [vmem:[%s3 + $0x48] sm:$0xff]
    %v225 = vld [vmem:[%s3 + $0x50] sm:$0xff]
    %v226 = vld [vmem:[%s3 + $0x58] sm:$0xff]
    %v227 = vld [vmem:[%s3 + $0x60] sm:$0xff]
    %v228 = vld [vmem:[%s3 + $0x68] sm:$0xff]
    %v229 = vld [vmem:[%s3 + $0x70] sm:$0xff]
    %v230 = vld [vmem:[%s3 + $0x78] sm:$0xff]
    %v232 = vlaneseq
    %v233 = vshrl.u32 %v232, 7
    %v234 = vsub.s32 0, %v233
    %v235 = vrot.slane %v38, %v234
    %237 = vmatprep.subr.mxu0 0.0
    %238 = vmatpush1.msra.mxu0 %v215
    %239 = vmatprep.subr.mxu0 0.0
    %240 = vmatpush1.msra.mxu0 %v216
    %241 = vmatprep.subr.mxu0 0.0
    %242 = vmatpush1.msra.mxu0 %v217
    %243 = vmatprep.subr.mxu0 0.0
    %244 = vmatpush1.msra.mxu0 %v218
    %245 = vmatprep.subr.mxu0 0.0
    %246 = vmatpush1.msra.mxu0 %v219
    %247 = vmatprep.subr.mxu0 0.0
    %248 = vmatpush1.msra.mxu0 %v220
    %249 = vmatprep.subr.mxu0 0.0
    %250 = vmatpush1.msra.mxu0 %v221
    %251 = vmatprep.subr.mxu0 0.0
    %252 = vmatpush1.msra.mxu0 %v222
    %253 = vmatprep.subr.mxu0 0.0
    %254 = vmatpush1.msra.mxu0 %v223
    %255 = vmatprep.subr.mxu0 0.0
    %256 = vmatpush1.msra.mxu0 %v224
    %257 = vmatprep.subr.mxu0 0.0
    %258 = vmatpush1.msra.mxu0 %v225
    %259 = vmatprep.subr.mxu0 0.0
    %260 = vmatpush1.msra.mxu0 %v226
    %261 = vmatprep.subr.mxu0 0.0
    %262 = vmatpush1.msra.mxu0 %v227
    %263 = vmatprep.subr.mxu0 0.0
    %264 = vmatpush1.msra.mxu0 %v228
    %265 = vmatprep.subr.mxu0 0.0
    %266 = vmatpush1.msra.mxu0 %v229
    %267 = vmatprep.subr.mxu0 0.0
    %268 = vmatpush1.msra.mxu0 %v230
    %269 = vmatprep.subr.mxu0 0.0
    %270 = vmatpush1.msra.mxu0 0.0
    %271 = vmatprep.subr.mxu0 0.0
    %272 = vmatpush1.msra.mxu0 0.0
    %273 = vmatprep.subr.mxu0 0.0
    %274 = vmatpush1.msra.mxu0 0.0
    %275 = vmatprep.subr.mxu0 0.0
    %276 = vmatpush1.msra.mxu0 0.0
    %277 = vmatprep.subr.mxu0 0.0
    %278 = vmatpush1.msra.mxu0 0.0
    %279 = vmatprep.subr.mxu0 0.0
    %280 = vmatpush1.msra.mxu0 0.0
    %281 = vmatprep.subr.mxu0 0.0
    %282 = vmatpush1.msra.mxu0 0.0
    %283 = vmatprep.subr.mxu0 0.0
    %284 = vmatpush1.msra.mxu0 0.0
    %285 = vmatprep.subr.mxu0 0.0
    %286 = vmatpush1.msra.mxu0 0.0
    %287 = vmatprep.subr.mxu0 0.0
    %288 = vmatpush1.msra.mxu0 0.0
    %289 = vmatprep.subr.mxu0 0.0
    %290 = vmatpush1.msra.mxu0 0.0
    %291 = vmatprep.subr.mxu0 0.0
    %292 = vmatpush1.msra.mxu0 0.0
    %293 = vmatprep.subr.mxu0 0.0
    %294 = vmatpush1.msra.mxu0 0.0
    %295 = vmatprep.subr.mxu0 0.0
    %296 = vmatpush1.msra.mxu0 0.0
    %297 = vmatprep.subr.mxu0 0.0
    %298 = vmatpush1.msra.mxu0 0.0
    %299 = vmatprep.subr.mxu0 0.0
    %300 = vmatpush1.msra.mxu0 0.0
    %301 = vmatprep.mubr.f32.mxu0 0.0
    %302 = vmatmul.mubr.f32.gmra.mrb[0].mxu0 %v214
    %v303 = vpop.f32.mrb[0].mxu0
    %v304 = vadd.f32 %v235, %v303
    %v305 = vpop.f32.mrb[0].mxu0
    %306 = vdwg.mxu0
    %vm307 = vcmask 64512
    %308 = vst.msk [vmem:[#allocation5] sm:$0xff] %vm307, %v304
    // Predicated region
    $region26: #{tpu_custom_call.1} parent=1 // pred_check
      _
    $region27: #{tpu_custom_call.1} parent=1 // pred_check_branch
      %310 = sbr.rel (0) target = $region29
    $region28: #{tpu_custom_call.1} parent=1 // pred_region
      %s312 = ssub.s32 128, 128
      %313 = vsyncadd [#allocation4], %s312
      %s315 = sshll.u32 [#allocation5], 4
      %s316 = int_to_ptr.vmem [resolvable:$true] %s315
      %318 = dma.vmem_to_hbm [thread:$0]  %s316, 128, %s5, [#allocation4]
    $region29: #{tpu_custom_call.1} parent=1 // pred_fallthru
      _
    // Predicated region
    $region30: #{tpu_custom_call.1} parent=1 // pred_check
      _
    $region31: #{tpu_custom_call.1} parent=1 // pred_check_branch
      %320 = sbr.rel (0) target = $region33
    $region32: #{tpu_custom_call.1} parent=1 // pred_region
      %321 = dma.done [#allocation4], 128
    $region33: #{tpu_custom_call.1} parent=1 // pred_fallthru
      _
    %322 = vsyncpa [#allocation3], 1
    %323 = vsyncpa [#allocation4], 1

</llo_original>
